<compile_context>
chip_gen: v7x
topology: tpu7x:2x2x1
jax: 0.10.0
libtpu: 0.0.40
codegen_flags: <defaults>
</compile_context>

<pallas_src>
import functools
import math

import jax
import jax.numpy as jnp
import numpy as np
from jax.experimental import pallas as pl
from jax.experimental.pallas import tpu as pltpu

BN_EPS = 1e-3
VMEM_LIMIT = 48 * 1024 * 1024   # leaves headroom inside v7x's 64 MiB VMEM; fine on v5e/v6e

# ----------------------------------------------------------------------------
# EfficientNet-B7 architecture (width=2.0, depth=3.1, divisor=8)
# (cin, cout, kernel, stride, expand_ratio, num_repeat) per stage, already scaled.
# ----------------------------------------------------------------------------
STAGES = [
    (64, 32, 3, 1, 1, 4),
    (32, 48, 3, 2, 6, 7),
    (48, 80, 5, 2, 6, 7),
    (80, 160, 3, 2, 6, 10),
    (160, 224, 5, 1, 6, 10),
    (224, 384, 5, 2, 6, 13),
    (384, 640, 3, 1, 6, 4),
]


def build_block_cfgs():
    cfgs = []
    for (cin, cout, k, s, e, r) in STAGES:
        cfgs.append((cin, cout, k, s, e, max(1, int(cin * 0.25))))
        for _ in range(r - 1):
            cfgs.append((cout, cout, k, 1, e, max(1, int(cout * 0.25))))
    return tuple(cfgs)


BLOCK_CFGS = build_block_cfgs()        # 55 MBConv blocks for B7
STEM_OUT = 64
HEAD_IN = 640
HEAD_OUT = 2560


def _tile(dim, target, align):
    """Largest multiple of `align` <= target that divides `dim`, else the full dim.

    Guarantees the resulting block dim is either a multiple of `align` (8 for sublane,
    128 for lane dims) or equal to the full array dim, satisfying TPU tiling rules.
    """
    if dim <= target:
        return dim
    t = (target // align) * align
    while t >= align:
        if dim % t == 0:
            return t
        t -= align
    return dim


# ----------------------------------------------------------------------------
# Pallas kernels
# ----------------------------------------------------------------------------


def _mm_kernel(act, a_ref, w_ref, b_ref, o_ref, acc_ref):
    """Tiled matmul with K accumulation; bias + activation fused in the epilogue."""
    k = pl.program_id(2)

    @pl.when(k == 0)
    def _():
        acc_ref[...] = jnp.zeros_like(acc_ref)

    acc_ref[...] += jnp.dot(a_ref[...], w_ref[...],
                            preferred_element_type=jnp.float32)

    @pl.when(k == pl.num_programs(2) - 1)
    def _():
        y = acc_ref[...] + b_ref[...]
        if act == "swish":
            y = y * jax.nn.sigmoid(y)
        elif act == "sigmoid":
            y = jax.nn.sigmoid(y)
        o_ref[...] = y.astype(o_ref.dtype)


@functools.partial(jax.jit, static_argnames=("act", "out_dtype"))
def matmul_bias_act(a, w, b, act="none", out_dtype=jnp.bfloat16):
    """o = act(a @ w + b)   a:(M,K)  w:(K,N)  b:(N,)   bf16 MXU inputs, f32 accumulate."""
    M, K = a.shape
    N = w.shape[1]
    tm = _tile(M, 256, 8)
    tn = _tile(N, 256, 128)
    tk = _tile(K, 512, 128)
    grid = (M // tm, N // tn, K // tk)
    return pl.pallas_call(
        functools.partial(_mm_kernel, act),
        out_shape=jax.ShapeDtypeStruct((M, N), out_dtype),
        grid_spec=pltpu.PrefetchScalarGridSpec(
            num_scalar_prefetch=0,
            grid=grid,
            in_specs=[pl.BlockSpec((tm, tk), lambda i, j, k: (i, k)),
                      pl.BlockSpec((tk, tn), lambda i, j, k: (k, j)),
                      pl.BlockSpec((1, tn), lambda i, j, k: (0, j))],
            out_specs=pl.BlockSpec((tm, tn), lambda i, j, k: (i, j)),
            scratch_shapes=[pltpu.VMEM((tm, tn), jnp.float32)]),
        compiler_params=pltpu.CompilerParams(
            dimension_semantics=("parallel", "parallel", "arbitrary"),
            vmem_limit_bytes=VMEM_LIMIT),
    )(a.astype(jnp.bfloat16), w.astype(jnp.bfloat16),
      b.reshape(1, N).astype(jnp.float32))


def _proj_kernel(has_res, x_ref, g_ref, w_ref, b_ref, *refs):
    """(SE-gate * x) @ W + b (+ residual)  fused projection kernel."""
    if has_res:
        r_ref, o_ref, acc_ref = refs
    else:
        o_ref, acc_ref = refs
    k = pl.program_id(2)

    @pl.when(k == 0)
    def _():
        acc_ref[...] = jnp.zeros_like(acc_ref)

    xg = x_ref[0] * g_ref[0]                              # (thw, tk) * (1, tk), bf16
    acc_ref[...] += jnp.dot(xg, w_ref[...], preferred_element_type=jnp.float32)

    @pl.when(k == pl.num_programs(2) - 1)
    def _():
        y = acc_ref[...] + b_ref[...]
        if has_res:
            y = y + r_ref[0].astype(jnp.float32)
        o_ref[0] = y.astype(o_ref.dtype)


@jax.jit
def project_se_residual(x3, g, w, b, res=None):
    """x3:(N,HW,K) * g:(N,1,K)  @  w:(K,Co) + b  (+ res:(N,HW,Co))  ->  (N,HW,Co)."""
    Nb, HW, K = x3.shape
    Co = w.shape[1]
    thw = _tile(HW, 256, 8)
    tk = _tile(K, 512, 128)
    has_res = res is not None

    in_specs = [pl.BlockSpec((1, thw, tk), lambda n, h, k: (n, h, k)),
                pl.BlockSpec((1, 1, tk), lambda n, h, k: (n, 0, k)),
                pl.BlockSpec((tk, Co), lambda n, h, k: (k, 0)),
                pl.BlockSpec((1, Co), lambda n, h, k: (0, 0))]
    args = [x3.astype(jnp.bfloat16), g.astype(jnp.bfloat16),
            w.astype(jnp.bfloat16), b.reshape(1, Co).astype(jnp.float32)]
    if has_res:
        in_specs.append(pl.BlockSpec((1, thw, Co), lambda n, h, k: (n, h, 0)))
        args.append(res.astype(jnp.bfloat16))

    return pl.pallas_call(
        functools.partial(_proj_kernel, has_res),
        out_shape=jax.ShapeDtypeStruct((Nb, HW, Co), jnp.bfloat16),
        grid_spec=pltpu.PrefetchScalarGridSpec(
            num_scalar_prefetch=0,
            grid=(Nb, HW // thw, K // tk),
            in_specs=in_specs,
            out_specs=pl.BlockSpec((1, thw, Co), lambda n, h, k: (n, h, 0)),
            scratch_shapes=[pltpu.VMEM((thw, Co), jnp.float32)]),
        compiler_params=pltpu.CompilerParams(
            dimension_semantics=("parallel", "parallel", "arbitrary"),
            vmem_limit_bytes=VMEM_LIMIT),
    )(*args)


def _dwconv_kernel(kk, p_ref, w_ref, b_ref, o_ref):
    acc = jnp.zeros(o_ref.shape, jnp.float32) + b_ref[...]
    for t in range(kk):                                   # unrolled k*k MACs (VPU)
        acc = acc + p_ref[t].astype(jnp.float32) * w_ref[t].astype(jnp.float32)
    o_ref[...] = (acc * jax.nn.sigmoid(acc)).astype(o_ref.dtype)   # BN folded, swish fused


@jax.jit
def dwconv_bias_swish(patches, w, b):
    """patches:(k*k, M, C)  w:(k*k, 1, C)  b:(C,)  ->  (M, C)   tiled over M."""
    kk, M, C = patches.shape
    tm = _tile(M, 512, 8)
    return pl.pallas_call(
        functools.partial(_dwconv_kernel, kk),
        out_shape=jax.ShapeDtypeStruct((M, C), jnp.bfloat16),
        grid_spec=pltpu.PrefetchScalarGridSpec(
            num_scalar_prefetch=0,
            grid=(M // tm,),
            in_specs=[pl.BlockSpec((kk, tm, C), lambda i: (0, i, 0)),
                      pl.BlockSpec((kk, 1, C), lambda i: (0, 0, 0)),
                      pl.BlockSpec((1, C), lambda i: (0, 0))],
            out_specs=pl.BlockSpec((tm, C), lambda i: (i, 0))),
        compiler_params=pltpu.CompilerParams(
            dimension_semantics=("parallel",),
            vmem_limit_bytes=VMEM_LIMIT),
    )(patches.astype(jnp.bfloat16), w.astype(jnp.bfloat16),
      b.reshape(1, C).astype(jnp.float32))


def _pool_kernel(inv, x_ref, o_ref):
    h = pl.program_id(0)

    @pl.when(h == 0)
    def _():
        o_ref[...] = jnp.zeros_like(o_ref)

    o_ref[...] += jnp.sum(x_ref[...].astype(jnp.float32), axis=1)

    @pl.when(h == pl.num_programs(0) - 1)
    def _():
        o_ref[...] = o_ref[...] * inv


@jax.jit
def global_avg_pool(x):
    """x:(N, HW, C) -> mean over HW -> (N, C)   tiled reduction over HW."""
    N, HW, C = x.shape
    thw = _tile(HW, 512, 8)
    return pl.pallas_call(
        functools.partial(_pool_kernel, 1.0 / HW),
        out_shape=jax.ShapeDtypeStruct((N, C), jnp.float32),
        grid_spec=pltpu.PrefetchScalarGridSpec(
            num_scalar_prefetch=0,
            grid=(HW // thw,),
            in_specs=[pl.BlockSpec((N, thw, C), lambda h: (0, h, 0))],
            out_specs=pl.BlockSpec((N, C), lambda h: (0, 0))),
        compiler_params=pltpu.CompilerParams(
            dimension_semantics=("arbitrary",),
            vmem_limit_bytes=VMEM_LIMIT),
    )(x)


# ----------------------------------------------------------------------------
# Glue (padding / patch extraction / block wiring) -- plain JAX
# ----------------------------------------------------------------------------


def _same_pad(x, k, s):
    """TF/EfficientNet 'same' padding for NHWC."""
    _, H, W, _ = x.shape

    def amt(n):
        out = -(-n // s)
        total = max((out - 1) * s + k - n, 0)
        return (total // 2, total - total // 2)

    return jnp.pad(x, ((0, 0), amt(H), amt(W), (0, 0)))


def _extract_patches(xp, k, s, Ho, Wo):
    """xp:(N,Hp,Wp,C) -> (k*k, N, Ho, Wo, C), t ordered (kh, kw)."""
    cols = []
    for kh in range(k):
        for kw in range(k):
            cols.append(xp[:, kh: kh + (Ho - 1) * s + 1: s,
                           kw: kw + (Wo - 1) * s + 1: s, :])
    return jnp.stack(cols, axis=0)


@functools.partial(jax.jit, static_argnames=("k", "s", "act"))
def conv2d_same(x, w_mat, b, k, s, act):
    """General kxk conv via im2col + tiled Pallas matmul.  x NHWC, w_mat:(k*k*Cin, Cout)."""
    N, H, W, C = x.shape
    Ho, Wo = -(-H // s), -(-W // s)
    xp = _same_pad(x, k, s)
    pat = _extract_patches(xp, k, s, Ho, Wo)                  # (k*k,N,Ho,Wo,C)
    pat = jnp.transpose(pat, (1, 2, 3, 0, 4)).reshape(N * Ho * Wo, k * k * C)
    y = matmul_bias_act(pat, w_mat, b, act=act)
    return y.reshape(N, Ho, Wo, -1)


@functools.partial(jax.jit, static_argnames=("cfg",))
def mbconv_block(x, p, cfg):
    cin, cout, k, s, expand, cse = cfg
    N, H, W, _ = x.shape
    inp = x
    cexp = cin * expand

    # expansion 1x1 conv + BN + swish
    if expand != 1:
        h = matmul_bias_act(x.reshape(N * H * W, cin), p["ew"], p["eb"], act="swish")
        h = h.reshape(N, H, W, cexp)
    else:
        h = x

    # depthwise kxk conv (stride s, same padding) + BN + swish
    Ho, Wo = -(-H // s), -(-W // s)
    hp = _same_pad(h, k, s)
    pat = _extract_patches(hp, k, s, Ho, Wo).reshape(k * k, N * Ho * Wo, cexp)
    d = dwconv_bias_swish(pat, p["dw"], p["db"])              # (M, cexp) bf16
    d3 = d.reshape(N, Ho * Wo, cexp)

    # squeeze & excite (tiny matmuls; M = batch)
    sq = global_avg_pool(d3)                                       # (N, cexp) f32
    sq = matmul_bias_act(sq, p["sw1"], p["sb1"], act="swish")      # (N, cse)
    g = matmul_bias_act(sq, p["sw2"], p["sb2"], act="sigmoid")     # (N, cexp)

    # projection 1x1 conv + BN, with SE gate and residual fused into the epilogue
    res = inp.reshape(N, H * W, cin) if (s == 1 and cin == cout) else None
    y = project_se_residual(d3, g.reshape(N, 1, cexp), p["pw"], p["pb"], res)
    return y.reshape(N, Ho, Wo, cout)


def efficientnet_b7_forward(x_nchw, params):
    x = jnp.transpose(x_nchw.astype(jnp.float32), (0, 2, 3, 1))   # NCHW -> NHWC
    # stem: 3x3 stride-2 conv + BN + swish
    x = conv2d_same(x, params["stem_w"], params["stem_b"], k=3, s=2, act="swish")
    # MBConv blocks (jit cache reuses compiled block per distinct (cfg, shape))
    for p, cfg in zip(params["blocks"], BLOCK_CFGS):
        x = mbconv_block(x, p, cfg)
    # head 1x1 conv + BN + swish
    N, H, W, C = x.shape
    x = matmul_bias_act(x.reshape(N * H * W, C), params["head_w"], params["head_b"],
                        act="swish")
    x = x.reshape(N, H * W, HEAD_OUT)
    # global average pool
    x = global_avg_pool(x)                                         # (N, 2560) f32
    # (dropout = identity at inference)
    logits = matmul_bias_act(x, params["fc_w"], params["fc_b"], act="none",
                             out_dtype=jnp.float32)
    return logits


# ----------------------------------------------------------------------------
# Deterministic parameter construction (BN folded, inference form)
# ----------------------------------------------------------------------------


def build_params(key, num_classes):
    cnt = [0]

    def nk():
        cnt[0] += 1
        return jax.random.fold_in(key, cnt[0])

    bnscale = float(1.0 / np.sqrt(1.0 + BN_EPS))   # gamma=1, beta=0, mean=0, var=1

    def conv_mat(k_in, cout, fan_in):
        w = jax.random.normal(nk(), (k_in, cout), jnp.float32)
        return w * np.float32(np.sqrt(2.0 / fan_in))

    params = {}
    # stem 3x3 conv, 3 -> 64, BN folded
    params["stem_w"] = conv_mat(3 * 3 * 3, STEM_OUT, 3 * 3 * 3) * bnscale
    params["stem_b"] = jnp.zeros((STEM_OUT,), jnp.float32)

    blocks = []
    for (cin, cout, k, s, expand, cse) in BLOCK_CFGS:
        p = {}
        cexp = cin * expand
        if expand != 1:
            p["ew"] = conv_mat(cin, cexp, cin) * bnscale
            p["eb"] = jnp.zeros((cexp,), jnp.float32)
        dw = jax.random.normal(nk(), (k * k, 1, cexp), jnp.float32)
        p["dw"] = dw * np.float32(np.sqrt(2.0 / (k * k))) * bnscale
        p["db"] = jnp.zeros((cexp,), jnp.float32)
        p["sw1"] = conv_mat(cexp, cse, cexp)
        p["sb1"] = jnp.zeros((cse,), jnp.float32)
        p["sw2"] = conv_mat(cse, cexp, cse)
        p["sb2"] = jnp.zeros((cexp,), jnp.float32)
        p["pw"] = conv_mat(cexp, cout, cexp) * bnscale
        p["pb"] = jnp.zeros((cout,), jnp.float32)
        blocks.append(p)
    params["blocks"] = blocks

    # head conv 640 -> 2560
    params["head_w"] = conv_mat(HEAD_IN, HEAD_OUT, HEAD_IN) * bnscale
    params["head_b"] = jnp.zeros((HEAD_OUT,), jnp.float32)

    # final FC (mimics module.init_param: kaiming_uniform_ weight, uniform(+-stdv) bias)
    bound = math.sqrt(6.0 / HEAD_OUT)
    params["fc_w"] = jax.random.uniform(nk(), (HEAD_OUT, num_classes), jnp.float32,
                                        -bound, bound)
    stdv = 1.0 / math.sqrt(HEAD_OUT)
    params["fc_b"] = jax.random.uniform(nk(), (num_classes,), jnp.float32, -stdv, stdv)
    return params


# ----------------------------------------------------------------------------


if __name__ == "__main__":
    num_classes = 10
    key = jax.random.PRNGKey(0)
    pkey, xkey = jax.random.split(key)

    params = build_params(pkey, num_classes)

    # small input consistent with the module: NCHW, 3 input channels
    x = jax.random.normal(xkey, (2, 3, 32, 32), jnp.float32)

    logits = efficientnet_b7_forward(x, params)
    logits = jax.block_until_ready(logits)
    assert logits.shape == (2, num_classes)
    assert bool(jnp.all(jnp.isfinite(logits)))
    print("KERNEL_OK")
</pallas_src>

<mosaic_0001>
module attributes {stable_mosaic.version = 11 : i64} {
  func.func @_mm_kernel(%arg0: i32, %arg1: i32, %arg2: i32, %arg3: memref<256x27xbf16, #tpu.memory_space<vmem>>, %arg4: memref<27x64xbf16, #tpu.memory_space<vmem>>, %arg5: memref<1x64xf32, #tpu.memory_space<vmem>>, %arg6: memref<256x64xbf16, #tpu.memory_space<vmem>>, %arg7: memref<256x64xf32, #tpu.memory_space<vmem>>) attributes {dimension_semantics = [#tpu.dimension_semantics<parallel>, #tpu.dimension_semantics<parallel>, #tpu.dimension_semantics<arbitrary>], iteration_bounds = array<i64: 2, 1, 1>, scalar_prefetch = 0 : i64, scratch_operands = 1 : i64, tpu.core_type = #tpu.core_type<tc>, window_params = [{transform_indices = @transform_0, window_bounds = array<i64: 256, 27>}, {transform_indices = @transform_1, window_bounds = array<i64: 27, 64>}, {transform_indices = @transform_2, window_bounds = array<i64: 1, 64>}, {transform_indices = @transform_3, window_bounds = array<i64: 256, 64>}]} {
    %c0_i32 = arith.constant 0 : i32
    %0 = arith.cmpi eq, %arg2, %c0_i32 : i32
    %1 = arith.extui %0 : i1 to i32
    %c0_i32_0 = arith.constant 0 : i32
    %2 = arith.cmpi ne, %1, %c0_i32_0 : i32
    scf.if %2 {
      %cst_10 = arith.constant 0.000000e+00 : f32
      %12 = vector.broadcast %cst_10 : f32 to vector<256x64xf32>
      %c0_11 = arith.constant 0 : index
      %c0_12 = arith.constant 0 : index
      %13 = vector.load %arg7[%c0_11, %c0_12] : memref<256x64xf32, #tpu.memory_space<vmem>>, vector<256x64xf32>
      tpu.vector_store %arg7[%c0_11, %c0_12], %12 {strides = array<i32>} : memref<256x64xf32, #tpu.memory_space<vmem>>, vector<256x64xf32>,
    } else {
    }
    %c0 = arith.constant 0 : index
    %c0_1 = arith.constant 0 : index
    %3 = vector.load %arg7[%c0, %c0_1] : memref<256x64xf32, #tpu.memory_space<vmem>>, vector<256x64xf32>
    %c0_2 = arith.constant 0 : index
    %c0_3 = arith.constant 0 : index
    %4 = vector.load %arg3[%c0_2, %c0_3] : memref<256x27xbf16, #tpu.memory_space<vmem>>, vector<256x27xbf16>
    %c0_4 = arith.constant 0 : index
    %c0_5 = arith.constant 0 : index
    %5 = vector.load %arg4[%c0_4, %c0_5] : memref<27x64xbf16, #tpu.memory_space<vmem>>, vector<27x64xbf16>
    %cst = arith.constant dense<0.000000e+00> : vector<256x64xf32>
    %6 = tpu.matmul %4, %5, %cst {dimension_numbers = #tpu.dot_dimension_numbers<[1], [0], [0], [1], [0, 0, 1, 1], [], []>} : vector<256x27xbf16>, vector<27x64xbf16>, vector<256x64xf32> -> vector<256x64xf32>
    %7 = arith.addf %3, %6 : vector<256x64xf32>
    %c0_6 = arith.constant 0 : index
    %c0_7 = arith.constant 0 : index
    %8 = vector.load %arg7[%c0_6, %c0_7] : memref<256x64xf32, #tpu.memory_space<vmem>>, vector<256x64xf32>
    tpu.vector_store %arg7[%c0_6, %c0_7], %7 {strides = array<i32>} : memref<256x64xf32, #tpu.memory_space<vmem>>, vector<256x64xf32>,
    %c0_i32_8 = arith.constant 0 : i32
    %9 = arith.cmpi eq, %arg2, %c0_i32_8 : i32
    %10 = arith.extui %9 : i1 to i32
    %c0_i32_9 = arith.constant 0 : i32
    %11 = arith.cmpi ne, %10, %c0_i32_9 : i32
    scf.if %11 {
      %c0_10 = arith.constant 0 : index
      %c0_11 = arith.constant 0 : index
      %12 = vector.load %arg7[%c0_10, %c0_11] : memref<256x64xf32, #tpu.memory_space<vmem>>, vector<256x64xf32>
      %c0_12 = arith.constant 0 : index
      %c0_13 = arith.constant 0 : index
      %13 = vector.load %arg5[%c0_12, %c0_13] : memref<1x64xf32, #tpu.memory_space<vmem>>, vector<1x64xf32>
      %14 = vector.broadcast %13 : vector<1x64xf32> to vector<256x64xf32>
      %15 = arith.addf %12, %14 : vector<256x64xf32>
      %16 = arith.negf %15 : vector<256x64xf32>
      %17 = math.exp %16 : vector<256x64xf32>
      %cst_14 = arith.constant 1.000000e+00 : f32
      %18 = vector.broadcast %cst_14 : f32 to vector<256x64xf32>
      %19 = arith.addf %18, %17 : vector<256x64xf32>
      %20 = arith.divf %18, %19 : vector<256x64xf32>
      %21 = arith.mulf %15, %20 : vector<256x64xf32>
      %22 = arith.truncf %21 : vector<256x64xf32> to vector<256x64xbf16>
      %c0_15 = arith.constant 0 : index
      %c0_16 = arith.constant 0 : index
      %23 = vector.load %arg6[%c0_15, %c0_16] : memref<256x64xbf16, #tpu.memory_space<vmem>>, vector<256x64xbf16>
      tpu.vector_store %arg6[%c0_15, %c0_16], %22 {strides = array<i32>} : memref<256x64xbf16, #tpu.memory_space<vmem>>, vector<256x64xbf16>,
    } else {
    }
    return
  }
  func.func @transform_0(%arg0: i32, %arg1: i32, %arg2: i32) -> (i32, i32) {
    %c0_i32 = arith.constant 0 : i32
    return %arg0, %arg2 : i32, i32
  }
  func.func @transform_1(%arg0: i32, %arg1: i32, %arg2: i32) -> (i32, i32) {
    %c0_i32 = arith.constant 0 : i32
    return %arg2, %arg1 : i32, i32
  }
  func.func @transform_2(%arg0: i32, %arg1: i32, %arg2: i32) -> (i32, i32) {
    %c0_i32 = arith.constant 0 : i32
    %c0_i32_0 = arith.constant 0 : i32
    return %c0_i32, %arg1 : i32, i32
  }
  func.func @transform_3(%arg0: i32, %arg1: i32, %arg2: i32) -> (i32, i32) {
    %c0_i32 = arith.constant 0 : i32
    return %arg0, %arg1 : i32, i32
  }
}

</mosaic_0001>

<llo_original>
// kernel: matmul_bias_act.1
$region0: #{matmul_bias_act.1}
  #allocation0 [shape = 'u32[]', space=smem, size = 0x4, offset = 0x4, fixed_abs, tag = 'smem constant byte address 0x4 - core index']
  #allocation1 [shape = 'u32[144,128]{1,0:T(1,128)}', space=vmem, size = 0x12000, scoped, tag = 'internal scratch']
  #allocation2 [shape = 'f32[256,64]{1,0:T(8,128)}', space=vmem, size = 0x20000, scoped, tag = 'scratch operand']
  %s0 = inlined_call_operand.vmem [shape: bf16[512,27], index: 0, kind: input, shape index: {}]
  %s1 = inlined_call_operand.vmem [shape: bf16[27,64], index: 1, kind: input, shape index: {}]
  %s2 = inlined_call_operand.vmem [shape: f32[1,64], index: 2, kind: input, shape index: {}]
  %s3 = inlined_call_operand.vmem [shape: bf16[512,64], index: 3, kind: output, shape index: {}]
  %s4 = sld [smem:[#allocation0]]
  $region53: #{matmul_bias_act.1} parent=0
    _
  %s6 = ssub.s32 1, %s4
  %s7 = scalar_select 0, %s6, %s4
  loop: start=0, step=1, limit=4
  $region2: #{matmul_bias_act.1} parent=0 // loop_pre_header
    _
  $region3: #{matmul_bias_act.1} parent=0 // loop_header
    %s9 = sphi 0, %s13
    %p10 = scmp.ge.s32.totalorder %s9, 4
    %s16 = sphi 0, %s35
    %s17 = sphi 0, %s31
    %s18 = sphi 0, %s27
    %s19 = sphi 0, %s16
    %s20 = sphi 0, %s17
    %s21 = sphi 0, %s18
    %s22 = sphi 0, %s19
    %s23 = sphi 0, %s20
    %s24 = sphi 0, %s21
    %s40 = sphi 0, %s42
    %s43 = sphi 0, %s40
    %s44 = sphi 0, %s43
    %s60 = sphi 0, %s44
    %s68 = sphi 0, %s70
    %s71 = sphi 0, %s68
    %s72 = sphi 0, %s71
    %s88 = sphi 0, %s72
    %s94 = sphi 0, %s96
    %s97 = sphi 0, %s94
    %s98 = sphi 0, %s97
    %s114 = sphi 0, %s98
    %s122 = sphi 0, %s124
    %s125 = sphi 0, %s122
    %s126 = sphi 0, %s125
    %s142 = sphi 0, %s126
  $region4: #{matmul_bias_act.1} parent=0 // loop_header_branch
    %12 = sbr.rel (%p10) target = $region8
  $region5: #{matmul_bias_act.1} parent=0 // loop_body
    %s14 = ssub.s32 %s9, 1
    %s15 = ssub.s32 %s9, 2
    %s25 = sadd.s32 1, %s18
    %p26 = scmp.ge.s32.totalorder %s25, 1
    %s27 = scalar_select %p26, 0, %s25
    %s28 = sadd.s32 1, %s17
    %s29 = scalar_select %p26, %s28, %s17
    %p30 = scmp.ge.s32.totalorder %s29, 1
    %s31 = scalar_select %p30, 0, %s29
    %s32 = sadd.s32 1, %s16
    %s33 = scalar_select %p30, %s32, %s16
    %p34 = scmp.ge.s32.totalorder %s33, 2
    %s35 = scalar_select %p34, 0, %s33
    %s36 = ssub.s32 %s16, %s35
    %s37 = ssub.s32 %s18, %s27
    %s38 = sor.u32 %s36, %s37
    %p39 = scmp.eq.s32.totalorder %s38, 0
    %s41 = sadd.s32 %s40, 1
    %s42 = scalar_select %p39, %s40, %s41
    %p45 = pneg %p39
    %p46 = scmp.eq.s32.totalorder %s9, 1
    %p47 = por %p45, %p46
    %p48 = scmp.ne.s32.totalorder %s40, %s43
    %p49 = scmp.eq.s32.totalorder %s9, 0
    %p50 = por %p48, %p49
    %p51 = scmp.ne.s32.totalorder %s40, %s43
    %p52 = scmp.eq.s32.totalorder %s14, 1
    %p53 = por %p51, %p52
    %p54 = scmp.ne.s32.totalorder %s43, %s44
    %p55 = scmp.eq.s32.totalorder %s14, 0
    %p56 = por %p54, %p55
    %p57 = scmp.ne.s32.totalorder %s43, %s44
    %p58 = scmp.eq.s32.totalorder %s15, 1
    %p59 = por %p57, %p58
    %p61 = scmp.ne.s32.totalorder %s44, %s60
    %p62 = scmp.eq.s32.totalorder %s15, 0
    %p63 = por %p61, %p62
    %s64 = ssub.s32 %s18, %s27
    %s65 = ssub.s32 %s17, %s31
    %s66 = sor.u32 %s64, %s65
    %p67 = scmp.eq.s32.totalorder %s66, 0
    %s69 = sadd.s32 %s68, 1
    %s70 = scalar_select %p67, %s68, %s69
    %p73 = pneg %p67
    %p74 = scmp.eq.s32.totalorder %s9, 1
    %p75 = por %p73, %p74
    %p76 = scmp.ne.s32.totalorder %s68, %s71
    %p77 = scmp.eq.s32.totalorder %s9, 0
    %p78 = por %p76, %p77
    %p79 = scmp.ne.s32.totalorder %s68, %s71
    %p80 = scmp.eq.s32.totalorder %s14, 1
    %p81 = por %p79, %p80
    %p82 = scmp.ne.s32.totalorder %s71, %s72
    %p83 = scmp.eq.s32.totalorder %s14, 0
    %p84 = por %p82, %p83
    %p85 = scmp.ne.s32.totalorder %s71, %s72
    %p86 = scmp.eq.s32.totalorder %s15, 1
    %p87 = por %p85, %p86
    %p89 = scmp.ne.s32.totalorder %s72, %s88
    %p90 = scmp.eq.s32.totalorder %s15, 0
    %p91 = por %p89, %p90
    %s92 = ssub.s32 %s17, %s31
    %p93 = scmp.eq.s32.totalorder %s92, 0
    %s95 = sadd.s32 %s94, 1
    %s96 = scalar_select %p93, %s94, %s95
    %p99 = pneg %p93
    %p100 = scmp.eq.s32.totalorder %s9, 1
    %p101 = por %p99, %p100
    %p102 = scmp.ne.s32.totalorder %s94, %s97
    %p103 = scmp.eq.s32.totalorder %s9, 0
    %p104 = por %p102, %p103
    %p105 = scmp.ne.s32.totalorder %s94, %s97
    %p106 = scmp.eq.s32.totalorder %s14, 1
    %p107 = por %p105, %p106
    %p108 = scmp.ne.s32.totalorder %s97, %s98
    %p109 = scmp.eq.s32.totalorder %s14, 0
    %p110 = por %p108, %p109
    %p111 = scmp.ne.s32.totalorder %s97, %s98
    %p112 = scmp.eq.s32.totalorder %s15, 1
    %p113 = por %p111, %p112
    %p115 = scmp.ne.s32.totalorder %s98, %s114
    %p116 = scmp.eq.s32.totalorder %s15, 0
    %p117 = por %p115, %p116
    %s118 = ssub.s32 %s16, %s35
    %s119 = ssub.s32 %s17, %s31
    %s120 = sor.u32 %s118, %s119
    %p121 = scmp.eq.s32.totalorder %s120, 0
    %s123 = sadd.s32 %s122, 1
    %s124 = scalar_select %p121, %s122, %s123
    %p127 = pneg %p121
    %p128 = scmp.eq.s32.totalorder %s9, 1
    %p129 = por %p127, %p128
    %p130 = scmp.ne.s32.totalorder %s122, %s125
    %p131 = scmp.eq.s32.totalorder %s9, 0
    %p132 = por %p130, %p131
    %p133 = scmp.ne.s32.totalorder %s122, %s125
    %p134 = scmp.eq.s32.totalorder %s14, 1
    %p135 = por %p133, %p134
    %p136 = scmp.ne.s32.totalorder %s125, %s126
    %p137 = scmp.eq.s32.totalorder %s14, 0
    %p138 = por %p136, %p137
    %p139 = scmp.ne.s32.totalorder %s125, %s126
    %p140 = scmp.eq.s32.totalorder %s15, 1
    %p141 = por %p139, %p140
    %p143 = scmp.ne.s32.totalorder %s126, %s142
    %p144 = scmp.eq.s32.totalorder %s15, 0
    %p145 = por %p143, %p144
    %p146 = scmp.le.s32.totalorder 1, %s9
    %p147 = scmp.lt.s32.totalorder %s9, 3
    %p148 = pnand %p146, %p147
    %p149 = pneg %p148
    // Predicated region
    $region9: #{matmul_bias_act.1} parent=5 // pred_check
      _
    $region10: #{matmul_bias_act.1} parent=5 // pred_check_branch
      %151 = sbr.rel (%p148) target = $region12
    $region11: #{matmul_bias_act.1} parent=5 // pred_region
      %s152 = ssub.s32 %s9, 1
      // Predicated region
      $region13: #{matmul_bias_act.1} parent=11 // pred_check
        %p153 = pneg %p84
      $region14: #{matmul_bias_act.1} parent=11 // pred_check_branch
        %155 = sbr.rel (%p153) target = $region16
      $region15: #{matmul_bias_act.1} parent=11 // pred_region
        %s156 = smul.u32 4, %s21
        %p157 = scmp.lt.s32.totalorder %s156, 3
        %s158 = scalar_select %p157, %s156, 3
        %p159 = scmp.lt.s32.totalorder %s20, 0
        %s160 = scalar_select %p159, %s20, 0
        %s161 = sadd.s32 %s160, %s158
        %s162 = smul.addr %s161, 4
        %s163 = scalar_lea.vmem %s1, %s162
        %s164 = smul.u32 4, %s21
      $region16: #{matmul_bias_act.1} parent=11 // pred_fallthru
        _
      // Predicated region
      $region17: #{matmul_bias_act.1} parent=11 // pred_check
        %p165 = pneg %p110
      $region18: #{matmul_bias_act.1} parent=11 // pred_check_branch
        %167 = sbr.rel (%p165) target = $region20
      $region19: #{matmul_bias_act.1} parent=11 // pred_region
        %p168 = scmp.lt.s32.totalorder %s20, 0
        %s169 = scalar_select %p168, %s20, 0
        %s170 = scalar_lea.vmem %s2, %s169
      $region20: #{matmul_bias_act.1} parent=11 // pred_fallthru
        _
    $region12: #{matmul_bias_act.1} parent=5 // pred_fallthru
      _
    %p171 = scmp.lt.s32.totalorder %s9, 2
    // Predicated region
    $region21: #{matmul_bias_act.1} parent=5 // pred_check
      %p172 = pneg %p171
    $region22: #{matmul_bias_act.1} parent=5 // pred_check_branch
      %174 = sbr.rel (%p172) target = $region24
    $region23: #{matmul_bias_act.1} parent=5 // pred_region
      // Predicated region
      $region25: #{matmul_bias_act.1} parent=23 // pred_check
        %p175 = pneg %p50
      $region26: #{matmul_bias_act.1} parent=23 // pred_check_branch
        %177 = sbr.rel (%p175) target = $region28
      $region27: #{matmul_bias_act.1} parent=23 // pred_region
        %s178 = smul.u32 32, %s16
        %p179 = scmp.lt.s32.totalorder %s178, 63
        %s180 = scalar_select %p179, %s178, 63
        %p181 = scmp.lt.s32.totalorder %s18, 0
        %s182 = scalar_select %p181, %s18, 0
        %s183 = sadd.s32 %s182, %s180
        %s184 = smul.addr %s183, 4
        %s185 = scalar_lea.vmem %s0, %s184
        %s186 = smul.u32 32, %s16
      $region28: #{matmul_bias_act.1} parent=23 // pred_fallthru
        _
    $region24: #{matmul_bias_act.1} parent=5 // pred_fallthru
      _
    %p187 = scmp.le.s32.totalorder 1, %s9
    %p188 = scmp.lt.s32.totalorder %s9, 3
    %p189 = pnand %p187, %p188
    %p190 = pneg %p189
    // Predicated region
    $region29: #{matmul_bias_act.1} parent=5 // pred_check
      _
    $region30: #{matmul_bias_act.1} parent=5 // pred_check_branch
      %192 = sbr.rel (%p189) target = $region32
    $region31: #{matmul_bias_act.1} parent=5 // pred_region
      %s193 = ssub.s32 %s9, 1
      %s194 = smul.u32 32, %s19
      %p195 = scmp.lt.s32.totalorder %s194, 63
      %s196 = scalar_select %p195, %s194, 63
      %p197 = scmp.lt.s32.totalorder %s21, 0
      %s198 = scalar_select %p197, %s21, 0
      %s199 = sadd.s32 %s198, %s196
      %s200 = smul.addr %s199, 4
      %s201 = scalar_lea.vmem %s0, %s200
      %p202 = pneg %p56
      %p203 = pneg %p53
      %s204 = smul.u32 4, %s21
      %p205 = scmp.lt.s32.totalorder %s204, 3
      %s206 = scalar_select %p205, %s204, 3
      %p207 = scmp.lt.s32.totalorder %s20, 0
      %s208 = scalar_select %p207, %s20, 0
      %s209 = sadd.s32 %s208, %s206
      %s210 = smul.addr %s209, 4
      %s211 = scalar_lea.vmem %s1, %s210
      %p212 = pneg %p84
      %p213 = pneg %p81
      %p214 = scmp.lt.s32.totalorder %s20, 0
      %s215 = scalar_select %p214, %s20, 0
      %s216 = scalar_lea.vmem %s2, %s215
      %p217 = pneg %p110
      %p218 = pneg %p107
      %p219 = pneg %p138
      %p220 = pneg %p135
      %s221 = smul.u32 32, %s19
      %p222 = scmp.lt.s32.totalorder %s221, 63
      %s223 = scalar_select %p222, %s221, 63
      %p224 = scmp.lt.s32.totalorder %s20, 0
      %s225 = scalar_select %p224, %s20, 0
      %s226 = sadd.s32 %s225, %s223
      %s227 = smul.addr %s226, 4
      %s228 = scalar_lea.vmem %s3, %s227
      %s229 = smul.u32 32, %s19
      %p230 = scmp.lt.s32.totalorder %s229, 63
      %s231 = scalar_select %p230, %s229, 63
      %p232 = scmp.lt.s32.totalorder %s21, 0
      %s233 = scalar_select %p232, %s21, 0
      %s234 = sadd.s32 %s233, %s231
      %s235 = smul.addr %s234, 4
      %s236 = scalar_lea.vmem %s0, %s235
      %s237 = smul.u32 32, %s19
      %s238 = smul.u32 4, %s21
      %p239 = scmp.lt.s32.totalorder %s238, 3
      %s240 = scalar_select %p239, %s238, 3
      %p241 = scmp.lt.s32.totalorder %s20, 0
      %s242 = scalar_select %p241, %s20, 0
      %s243 = sadd.s32 %s242, %s240
      %s244 = smul.addr %s243, 4
      %s245 = scalar_lea.vmem %s1, %s244
      %s246 = smul.u32 4, %s21
      %p247 = scmp.lt.s32.totalorder %s20, 0
      %s248 = scalar_select %p247, %s20, 0
      %s249 = scalar_lea.vmem %s2, %s248
      %s250 = smul.u32 32, %s19
      %p251 = scmp.lt.s32.totalorder %s250, 63
      %s252 = scalar_select %p251, %s250, 63
      %p253 = scmp.lt.s32.totalorder %s20, 0
      %s254 = scalar_select %p253, %s20, 0
      %s255 = sadd.s32 %s254, %s252
      %s256 = smul.addr %s255, 4
      %s257 = scalar_lea.vmem %s3, %s256
      %s258 = smul.u32 32, %s19
      %p260 = scmp.eq.s32.totalorder %s21, 0
      // Predicated region
      $region33: #{matmul_bias_act.1} parent=31 // pred_check
        %p261 = pneg %p260
      $region34: #{matmul_bias_act.1} parent=31 // pred_check_branch
        %263 = sbr.rel (%p261) target = $region36
      $region35: #{matmul_bias_act.1} parent=31 // pred_region
        %vm264 = vcmask 523264
        %265 = vst.msk [vmem:[#allocation2] sm:$0xff] %vm264, 0.0
        %266 = vst.msk [vmem:[#allocation2 + $0x8] sm:$0xff] %vm264, 0.0
        %267 = vst.msk [vmem:[#allocation2 + $0x10] sm:$0xff] %vm264, 0.0
        %268 = vst.msk [vmem:[#allocation2 + $0x18] sm:$0xff] %vm264, 0.0
        %269 = vst.msk [vmem:[#allocation2 + $0x20] sm:$0xff] %vm264, 0.0
        %270 = vst.msk [vmem:[#allocation2 + $0x28] sm:$0xff] %vm264, 0.0
        %271 = vst.msk [vmem:[#allocation2 + $0x30] sm:$0xff] %vm264, 0.0
        %272 = vst.msk [vmem:[#allocation2 + $0x38] sm:$0xff] %vm264, 0.0
        %273 = vst.msk [vmem:[#allocation2 + $0x40] sm:$0xff] %vm264, 0.0
        %274 = vst.msk [vmem:[#allocation2 + $0x48] sm:$0xff] %vm264, 0.0
        %275 = vst.msk [vmem:[#allocation2 + $0x50] sm:$0xff] %vm264, 0.0
        %276 = vst.msk [vmem:[#allocation2 + $0x58] sm:$0xff] %vm264, 0.0
        %277 = vst.msk [vmem:[#allocation2 + $0x60] sm:$0xff] %vm264, 0.0
        %278 = vst.msk [vmem:[#allocation2 + $0x68] sm:$0xff] %vm264, 0.0
        %279 = vst.msk [vmem:[#allocation2 + $0x70] sm:$0xff] %vm264, 0.0
        %280 = vst.msk [vmem:[#allocation2 + $0x78] sm:$0xff] %vm264, 0.0
        %281 = vst.msk [vmem:[#allocation2 + $0x80] sm:$0xff] %vm264, 0.0
        %282 = vst.msk [vmem:[#allocation2 + $0x88] sm:$0xff] %vm264, 0.0
        %283 = vst.msk [vmem:[#allocation2 + $0x90] sm:$0xff] %vm264, 0.0
        %284 = vst.msk [vmem:[#allocation2 + $0x98] sm:$0xff] %vm264, 0.0
        %285 = vst.msk [vmem:[#allocation2 + $0xa0] sm:$0xff] %vm264, 0.0
        %286 = vst.msk [vmem:[#allocation2 + $0xa8] sm:$0xff] %vm264, 0.0
        %287 = vst.msk [vmem:[#allocation2 + $0xb0] sm:$0xff] %vm264, 0.0
        %288 = vst.msk [vmem:[#allocation2 + $0xb8] sm:$0xff] %vm264, 0.0
        %289 = vst.msk [vmem:[#allocation2 + $0xc0] sm:$0xff] %vm264, 0.0
        %290 = vst.msk [vmem:[#allocation2 + $0xc8] sm:$0xff] %vm264, 0.0
        %291 = vst.msk [vmem:[#allocation2 + $0xd0] sm:$0xff] %vm264, 0.0
        %292 = vst.msk [vmem:[#allocation2 + $0xd8] sm:$0xff] %vm264, 0.0
        %293 = vst.msk [vmem:[#allocation2 + $0xe0] sm:$0xff] %vm264, 0.0
        %294 = vst.msk [vmem:[#allocation2 + $0xe8] sm:$0xff] %vm264, 0.0
        %295 = vst.msk [vmem:[#allocation2 + $0xf0] sm:$0xff] %vm264, 0.0
        %296 = vst.msk [vmem:[#allocation2 + $0xf8] sm:$0xff] %vm264, 0.0
      $region36: #{matmul_bias_act.1} parent=31 // pred_fallthru
        _
      %v297 = vld [vmem:[#allocation2] sm:$0xff]
      %v298 = vld [vmem:[#allocation2 + $0x8] sm:$0xff]
      %v299 = vld [vmem:[#allocation2 + $0x10] sm:$0xff]
      %v300 = vld [vmem:[#allocation2 + $0x18] sm:$0xff]
      %v301 = vld [vmem:[#allocation2 + $0x20] sm:$0xff]
      %v302 = vld [vmem:[#allocation2 + $0x28] sm:$0xff]
      %v303 = vld [vmem:[#allocation2 + $0x30] sm:$0xff]
      %v304 = vld [vmem:[#allocation2 + $0x38] sm:$0xff]
      %v305 = vld [vmem:[#allocation2 + $0x40] sm:$0xff]
      %v306 = vld [vmem:[#allocation2 + $0x48] sm:$0xff]
      %v307 = vld [vmem:[#allocation2 + $0x50] sm:$0xff]
      %v308 = vld [vmem:[#allocation2 + $0x58] sm:$0xff]
      %v309 = vld [vmem:[#allocation2 + $0x60] sm:$0xff]
      %v310 = vld [vmem:[#allocation2 + $0x68] sm:$0xff]
      %v311 = vld [vmem:[#allocation2 + $0x70] sm:$0xff]
      %v312 = vld [vmem:[#allocation2 + $0x78] sm:$0xff]
      %v313 = vld [vmem:[#allocation2 + $0x80] sm:$0xff]
      %v314 = vld [vmem:[#allocation2 + $0x88] sm:$0xff]
      %v315 = vld [vmem:[#allocation2 + $0x90] sm:$0xff]
      %v316 = vld [vmem:[#allocation2 + $0x98] sm:$0xff]
      %v317 = vld [vmem:[#allocation2 + $0xa0] sm:$0xff]
      %v318 = vld [vmem:[#allocation2 + $0xa8] sm:$0xff]
      %v319 = vld [vmem:[#allocation2 + $0xb0] sm:$0xff]
      %v320 = vld [vmem:[#allocation2 + $0xb8] sm:$0xff]
      %v321 = vld [vmem:[#allocation2 + $0xc0] sm:$0xff]
      %v322 = vld [vmem:[#allocation2 + $0xc8] sm:$0xff]
      %v323 = vld [vmem:[#allocation2 + $0xd0] sm:$0xff]
      %v324 = vld [vmem:[#allocation2 + $0xd8] sm:$0xff]
      %v325 = vld [vmem:[#allocation2 + $0xe0] sm:$0xff]
      %v326 = vld [vmem:[#allocation2 + $0xe8] sm:$0xff]
      %v327 = vld [vmem:[#allocation2 + $0xf0] sm:$0xff]
      %v328 = vld [vmem:[#allocation2 + $0xf8] sm:$0xff]
      %v329 = vld [vmem:[%s236] sm:$0xf]
      %v330 = vld [vmem:[%s236 + $0x4] sm:$0xf]
      %v331 = vld [vmem:[%s236 + $0x8] sm:$0xf]
      %v332 = vld [vmem:[%s236 + $0xc] sm:$0xf]
      %v333 = vld [vmem:[%s236 + $0x10] sm:$0xf]
      %v334 = vld [vmem:[%s236 + $0x14] sm:$0xf]
      %v335 = vld [vmem:[%s236 + $0x18] sm:$0xf]
      %v336 = vld [vmem:[%s236 + $0x1c] sm:$0xf]
      %v337 = vld [vmem:[%s236 + $0x20] sm:$0xf]
      %v338 = vld [vmem:[%s236 + $0x24] sm:$0xf]
      %v339 = vld [vmem:[%s236 + $0x28] sm:$0xf]
      %v340 = vld [vmem:[%s236 + $0x2c] sm:$0xf]
      %v341 = vld [vmem:[%s236 + $0x30] sm:$0xf]
      %v342 = vld [vmem:[%s236 + $0x34] sm:$0xf]
      %v343 = vld [vmem:[%s236 + $0x38] sm:$0xf]
      %v344 = vld [vmem:[%s236 + $0x3c] sm:$0xf]
      %v345 = vld [vmem:[%s236 + $0x40] sm:$0xf]
      %v346 = vld [vmem:[%s236 + $0x44] sm:$0xf]
      %v347 = vld [vmem:[%s236 + $0x48] sm:$0xf]
      %v348 = vld [vmem:[%s236 + $0x4c] sm:$0xf]
      %v349 = vld [vmem:[%s236 + $0x50] sm:$0xf]
      %v350 = vld [vmem:[%s236 + $0x54] sm:$0xf]
      %v351 = vld [vmem:[%s236 + $0x58] sm:$0xf]
      %v352 = vld [vmem:[%s236 + $0x5c] sm:$0xf]
      %v353 = vld [vmem:[%s236 + $0x60] sm:$0xf]
      %v354 = vld [vmem:[%s236 + $0x64] sm:$0xf]
      %v355 = vld [vmem:[%s236 + $0x68] sm:$0xf]
      %v356 = vld [vmem:[%s236 + $0x6c] sm:$0xf]
      %v357 = vld [vmem:[%s236 + $0x70] sm:$0xf]
      %v358 = vld [vmem:[%s236 + $0x74] sm:$0xf]
      %v359 = vld [vmem:[%s236 + $0x78] sm:$0xf]
      %v360 = vld [vmem:[%s236 + $0x7c] sm:$0xf]
      %v361 = vld [vmem:[%s245] sm:$0xf]
      %v362 = vld [vmem:[%s245 + $0x4] sm:$0xf]
      %v363 = vld [vmem:[%s245 + $0x8] sm:$0xf]
      %v364 = vld [vmem:[%s245 + $0xc] sm:$0x3]
      %v397 = vunpack.c.l.b16 %v329
      %v398 = vunpack.c.l.b16 %v330
      %v399 = vunpack.c.l.b16 %v331
      %v400 = vunpack.c.l.b16 %v332
      %v401 = vunpack.c.l.b16 %v333
      %v402 = vunpack.c.l.b16 %v334
      %v403 = vunpack.c.l.b16 %v335
      %v404 = vunpack.c.l.b16 %v336
      %v405 = vunpack.c.l.b16 %v337
      %v406 = vunpack.c.l.b16 %v338
      %v407 = vunpack.c.l.b16 %v339
      %v408 = vunpack.c.l.b16 %v340
      %v409 = vunpack.c.l.b16 %v341
      %v410 = vunpack.c.l.b16 %v342
      %v411 = vunpack.c.l.b16 %v343
      %v412 = vunpack.c.l.b16 %v344
      %v413 = vunpack.c.l.b16 %v345
      %v414 = vunpack.c.l.b16 %v346
      %v415 = vunpack.c.l.b16 %v347
      %v416 = vunpack.c.l.b16 %v348
      %v417 = vunpack.c.l.b16 %v349
      %v418 = vunpack.c.l.b16 %v350
      %v419 = vunpack.c.l.b16 %v351
      %v420 = vunpack.c.l.b16 %v352
      %v421 = vunpack.c.l.b16 %v353
      %v422 = vunpack.c.l.b16 %v354
      %v423 = vunpack.c.l.b16 %v355
      %v424 = vunpack.c.l.b16 %v356
      %v425 = vunpack.c.l.b16 %v357
      %v426 = vunpack.c.l.b16 %v358
      %v427 = vunpack.c.l.b16 %v359
      %v428 = vunpack.c.l.b16 %v360
      %v429 = vpack.c.b16 %v398, %v397
      %v430 = vpack.c.b16 %v400, %v399
      %v431 = vpack.c.b16 %v402, %v401
      %v432 = vpack.c.b16 %v404, %v403
      %v433 = vpack.c.b16 %v406, %v405
      %v434 = vpack.c.b16 %v408, %v407
      %v435 = vpack.c.b16 %v410, %v409
      %v436 = vpack.c.b16 %v412, %v411
      %v437 = vpack.c.b16 %v414, %v413
      %v438 = vpack.c.b16 %v416, %v415
      %v439 = vpack.c.b16 %v418, %v417
      %v440 = vpack.c.b16 %v420, %v419
      %v441 = vpack.c.b16 %v422, %v421
      %v442 = vpack.c.b16 %v424, %v423
      %v443 = vpack.c.b16 %v426, %v425
      %v444 = vpack.c.b16 %v428, %v427
      %v449 = vunpack.c.l.b16 %v361
      %v450 = vunpack.c.l.b16 %v362
      %v451 = vunpack.c.l.b16 %v363
      %v452 = vunpack.c.l.b16 %v364
      %v453 = vpack.c.b16 %v450, %v449
      %v454 = vpack.c.b16 %v452, %v451
      %vm456 = vcmask 220160
      %v458 = vsel %vm456, %v429, 0
      %v461 = vsel %vm456, %v430, 0
      %v464 = vsel %vm456, %v431, 0
      %v467 = vsel %vm456, %v432, 0
      %v470 = vsel %vm456, %v433, 0
      %v473 = vsel %vm456, %v434, 0
      %v476 = vsel %vm456, %v435, 0
      %v479 = vsel %vm456, %v436, 0
      %v482 = vsel %vm456, %v437, 0
      %v485 = vsel %vm456, %v438, 0
      %v488 = vsel %vm456, %v439, 0
      %v491 = vsel %vm456, %v440, 0
      %v494 = vsel %vm456, %v441, 0
      %v497 = vsel %vm456, %v442, 0
      %v500 = vsel %vm456, %v443, 0
      %v503 = vsel %vm456, %v444, 0
      %vm505 = vcmask 1044480
      %vm506 = vcmask 1045504
      %v507 = vsel %vm505, 4294967295, 65535
      %v508 = vsel %vm506, %v507, 0
      %v510 = vand.u32 %v454, %v508
      %512 = vmatprep.subr.bf16.mxu0 0
      %513 = vmatpush1.bf16.msra.mxu0 %v453
      %514 = vmatprep.subr.bf16.mxu0 0
      %515 = vmatpush1.bf16.msra.mxu0 %v510
      %516 = vmatprep.subr.bf16.mxu0 0
      %517 = vmatpush1.bf16.msra.mxu0 0
      %518 = vmatprep.subr.bf16.mxu0 0
      %519 = vmatpush1.bf16.msra.mxu0 0
      %520 = vmatprep.subr.bf16.mxu0 0
      %521 = vmatpush1.bf16.msra.mxu0 0
      %522 = vmatprep.subr.bf16.mxu0 0
      %523 = vmatpush1.bf16.msra.mxu0 0
      %524 = vmatprep.subr.bf16.mxu0 0
      %525 = vmatpush1.bf16.msra.mxu0 0
      %526 = vmatprep.subr.bf16.mxu0 0
      %527 = vmatpush1.bf16.msra.mxu0 0
      %528 = vmatprep.subr.bf16.mxu0 0
      %529 = vmatpush1.bf16.msra.mxu0 0
      %530 = vmatprep.subr.bf16.mxu0 0
      %531 = vmatpush1.bf16.msra.mxu0 0
      %532 = vmatprep.subr.bf16.mxu0 0
      %533 = vmatpush1.bf16.msra.mxu0 0
      %534 = vmatprep.subr.bf16.mxu0 0
      %535 = vmatpush1.bf16.msra.mxu0 0
      %536 = vmatprep.subr.bf16.mxu0 0
      %537 = vmatpush1.bf16.msra.mxu0 0
      %538 = vmatprep.subr.bf16.mxu0 0
      %539 = vmatpush1.bf16.msra.mxu0 0
      %540 = vmatprep.subr.bf16.mxu0 0
      %541 = vmatpush1.bf16.msra.mxu0 0
      %542 = vmatprep.subr.bf16.mxu0 0
      %543 = vmatpush1.bf16.msra.mxu0 0
      %544 = vmatprep.mubr.bf16.mxu0 0
      %545 = vmatmul.mubr.bf16.gmra.mrb[0].mxu0 %v458
      %v546 = vpop.f32.mrb[0].mxu0
      %v547 = vadd.f32 0.0, %v546
      %v548 = vpop.f32.mrb[0].mxu0
      %v549 = vpop.f32.mrb[0].mxu0
      %v550 = vadd.f32 0.0, %v549
      %v551 = vpop.f32.mrb[0].mxu0
      %552 = vmatprep.mubr.bf16.mxu0 0
      %553 = vmatmul.mubr.bf16.gmra.mrb[0].mxu0 %v461
      %v554 = vpop.f32.mrb[0].mxu0
      %v555 = vadd.f32 0.0, %v554
      %v556 = vpop.f32.mrb[0].mxu0
      %v557 = vpop.f32.mrb[0].mxu0
      %v558 = vadd.f32 0.0, %v557
      %v559 = vpop.f32.mrb[0].mxu0
      %560 = vmatprep.mubr.bf16.mxu0 0
      %561 = vmatmul.mubr.bf16.gmra.mrb[0].mxu0 %v464
      %v562 = vpop.f32.mrb[0].mxu0
      %v563 = vadd.f32 0.0, %v562
      %v564 = vpop.f32.mrb[0].mxu0
      %v565 = vpop.f32.mrb[0].mxu0
      %v566 = vadd.f32 0.0, %v565
      %v567 = vpop.f32.mrb[0].mxu0
      %568 = vmatprep.mubr.bf16.mxu0 0
      %569 = vmatmul.mubr.bf16.gmra.mrb[0].mxu0 %v467
      %v570 = vpop.f32.mrb[0].mxu0
      %v571 = vadd.f32 0.0, %v570
      %v572 = vpop.f32.mrb[0].mxu0
      %v573 = vpop.f32.mrb[0].mxu0
      %v574 = vadd.f32 0.0, %v573
      %v575 = vpop.f32.mrb[0].mxu0
      %576 = vmatprep.mubr.bf16.mxu0 0
      %577 = vmatmul.mubr.bf16.gmra.mrb[0].mxu0 %v470
      %v578 = vpop.f32.mrb[0].mxu0
      %v579 = vadd.f32 0.0, %v578
      %v580 = vpop.f32.mrb[0].mxu0
      %v581 = vpop.f32.mrb[0].mxu0
      %v582 = vadd.f32 0.0, %v581
      %v583 = vpop.f32.mrb[0].mxu0
      %584 = vmatprep.mubr.bf16.mxu0 0
      %585 = vmatmul.mubr.bf16.gmra.mrb[0].mxu0 %v473
      %v586 = vpop.f32.mrb[0].mxu0
      %v587 = vadd.f32 0.0, %v586
      %v588 = vpop.f32.mrb[0].mxu0
      %v589 = vpop.f32.mrb[0].mxu0
      %v590 = vadd.f32 0.0, %v589
      %v591 = vpop.f32.mrb[0].mxu0
      %592 = vmatprep.mubr.bf16.mxu0 0
      %593 = vmatmul.mubr.bf16.gmra.mrb[0].mxu0 %v476
      %v594 = vpop.f32.mrb[0].mxu0
      %v595 = vadd.f32 0.0, %v594
      %v596 = vpop.f32.mrb[0].mxu0
      %v597 = vpop.f32.mrb[0].mxu0
      %v598 = vadd.f32 0.0, %v597
      %v599 = vpop.f32.mrb[0].mxu0
      %600 = vmatprep.mubr.bf16.mxu0 0
      %601 = vmatmul.mubr.bf16.gmra.mrb[0].mxu0 %v479
      %v602 = vpop.f32.mrb[0].mxu0
      %v603 = vadd.f32 0.0, %v602
      %v604 = vpop.f32.mrb[0].mxu0
      %v605 = vpop.f32.mrb[0].mxu0
      %v606 = vadd.f32 0.0, %v605
      %v607 = vpop.f32.mrb[0].mxu0
      %608 = vmatprep.mubr.bf16.mxu0 0
      %609 = vmatmul.mubr.bf16.gmra.mrb[0].mxu0 %v482
      %v610 = vpop.f32.mrb[0].mxu0
      %v611 = vadd.f32 0.0, %v610
      %v612 = vpop.f32.mrb[0].mxu0
      %v613 = vpop.f32.mrb[0].mxu0
      %v614 = vadd.f32 0.0, %v613
      %v615 = vpop.f32.mrb[0].mxu0
      %616 = vmatprep.mubr.bf16.mxu0 0
      %617 = vmatmul.mubr.bf16.gmra.mrb[0].mxu0 %v485
      %v618 = vpop.f32.mrb[0].mxu0
      %v619 = vadd.f32 0.0, %v618
      %v620 = vpop.f32.mrb[0].mxu0
      %v621 = vpop.f32.mrb[0].mxu0
      %v622 = vadd.f32 0.0, %v621
      %v623 = vpop.f32.mrb[0].mxu0
      %624 = vmatprep.mubr.bf16.mxu0 0
      %625 = vmatmul.mubr.bf16.gmra.mrb[0].mxu0 %v488
      %v626 = vpop.f32.mrb[0].mxu0
      %v627 = vadd.f32 0.0, %v626
      %v628 = vpop.f32.mrb[0].mxu0
      %v629 = vpop.f32.mrb[0].mxu0
      %v630 = vadd.f32 0.0, %v629
      %v631 = vpop.f32.mrb[0].mxu0
      %632 = vmatprep.mubr.bf16.mxu0 0
      %633 = vmatmul.mubr.bf16.gmra.mrb[0].mxu0 %v491
      %v634 = vpop.f32.mrb[0].mxu0
      %v635 = vadd.f32 0.0, %v634
      %v636 = vpop.f32.mrb[0].mxu0
      %v637 = vpop.f32.mrb[0].mxu0
      %v638 = vadd.f32 0.0, %v637
      %v639 = vpop.f32.mrb[0].mxu0
      %640 = vmatprep.mubr.bf16.mxu0 0
      %641 = vmatmul.mubr.bf16.gmra.mrb[0].mxu0 %v494
      %v642 = vpop.f32.mrb[0].mxu0
      %v643 = vadd.f32 0.0, %v642
      %v644 = vpop.f32.mrb[0].mxu0
      %v645 = vpop.f32.mrb[0].mxu0
      %v646 = vadd.f32 0.0, %v645
      %v647 = vpop.f32.mrb[0].mxu0
      %648 = vmatprep.mubr.bf16.mxu0 0
      %649 = vmatmul.mubr.bf16.gmra.mrb[0].mxu0 %v497
      %v650 = vpop.f32.mrb[0].mxu0
      %v651 = vadd.f32 0.0, %v650
      %v652 = vpop.f32.mrb[0].mxu0
      %v653 = vpop.f32.mrb[0].mxu0
      %v654 = vadd.f32 0.0, %v653
      %v655 = vpop.f32.mrb[0].mxu0
      %656 = vmatprep.mubr.bf16.mxu0 0
      %657 = vmatmul.mubr.bf16.gmra.mrb[0].mxu0 %v500
      %v658 = vpop.f32.mrb[0].mxu0
      %v659 = vadd.f32 0.0, %v658
      %v660 = vpop.f32.mrb[0].mxu0
      %v661 = vpop.f32.mrb[0].mxu0
      %v662 = vadd.f32 0.0, %v661
      %v663 = vpop.f32.mrb[0].mxu0
      %664 = vmatprep.mubr.bf16.mxu0 0
      %665 = vmatmul.mubr.bf16.gmra.mrb[0].mxu0 %v503
      %v666 = vpop.f32.mrb[0].mxu0
      %v667 = vadd.f32 0.0, %v666
      %v668 = vpop.f32.mrb[0].mxu0
      %v669 = vpop.f32.mrb[0].mxu0
      %v670 = vadd.f32 0.0, %v669
      %v671 = vpop.f32.mrb[0].mxu0
      %672 = vdwg.mxu0
      %v673 = vadd.f32 %v297, %v547
      %v674 = vadd.f32 %v298, %v550
      %v675 = vadd.f32 %v299, %v555
      %v676 = vadd.f32 %v300, %v558
      %v677 = vadd.f32 %v301, %v563
      %v678 = vadd.f32 %v302, %v566
      %v679 = vadd.f32 %v303, %v571
      %v680 = vadd.f32 %v304, %v574
      %v681 = vadd.f32 %v305, %v579
      %v682 = vadd.f32 %v306, %v582
      %v683 = vadd.f32 %v307, %v587
      %v684 = vadd.f32 %v308, %v590
      %v685 = vadd.f32 %v309, %v595
      %v686 = vadd.f32 %v310, %v598
      %v687 = vadd.f32 %v311, %v603
      %v688 = vadd.f32 %v312, %v606
      %v689 = vadd.f32 %v313, %v611
      %v690 = vadd.f32 %v314, %v614
      %v691 = vadd.f32 %v315, %v619
      %v692 = vadd.f32 %v316, %v622
      %v693 = vadd.f32 %v317, %v627
      %v694 = vadd.f32 %v318, %v630
      %v695 = vadd.f32 %v319, %v635
      %v696 = vadd.f32 %v320, %v638
      %v697 = vadd.f32 %v321, %v643
      %v698 = vadd.f32 %v322, %v646
      %v699 = vadd.f32 %v323, %v651
      %v700 = vadd.f32 %v324, %v654
      %v701 = vadd.f32 %v325, %v659
      %v702 = vadd.f32 %v326, %v662
      %v703 = vadd.f32 %v327, %v667
      %v704 = vadd.f32 %v328, %v670
      %vm705 = vcmask 523264
      %706 = vst.msk [vmem:[#allocation2] sm:$0xff] %vm705, %v673
      %707 = vst.msk [vmem:[#allocation2 + $0x8] sm:$0xff] %vm705, %v674
      %708 = vst.msk [vmem:[#allocation2 + $0x10] sm:$0xff] %vm705, %v675
      %709 = vst.msk [vmem:[#allocation2 + $0x18] sm:$0xff] %vm705, %v676
      %710 = vst.msk [vmem:[#allocation2 + $0x20] sm:$0xff] %vm705, %v677
      %711 = vst.msk [vmem:[#allocation2 + $0x28] sm:$0xff] %vm705, %v678
      %712 = vst.msk [vmem:[#allocation2 + $0x30] sm:$0xff] %vm705, %v679
      %713 = vst.msk [vmem:[#allocation2 + $0x38] sm:$0xff] %vm705, %v680
      %714 = vst.msk [vmem:[#allocation2 + $0x40] sm:$0xff] %vm705, %v681
      %715 = vst.msk [vmem:[#allocation2 + $0x48] sm:$0xff] %vm705, %v682
      %716 = vst.msk [vmem:[#allocation2 + $0x50] sm:$0xff] %vm705, %v683
      %717 = vst.msk [vmem:[#allocation2 + $0x58] sm:$0xff] %vm705, %v684
      %718 = vst.msk [vmem:[#allocation2 + $0x60] sm:$0xff] %vm705, %v685
      %719 = vst.msk [vmem:[#allocation2 + $0x68] sm:$0xff] %vm705, %v686
      %720 = vst.msk [vmem:[#allocation2 + $0x70] sm:$0xff] %vm705, %v687
      %721 = vst.msk [vmem:[#allocation2 + $0x78] sm:$0xff] %vm705, %v688
      %722 = vst.msk [vmem:[#allocation2 + $0x80] sm:$0xff] %vm705, %v689
      %723 = vst.msk [vmem:[#allocation2 + $0x88] sm:$0xff] %vm705, %v690
      %724 = vst.msk [vmem:[#allocation2 + $0x90] sm:$0xff] %vm705, %v691
      %725 = vst.msk [vmem:[#allocation2 + $0x98] sm:$0xff] %vm705, %v692
      %726 = vst.msk [vmem:[#allocation2 + $0xa0] sm:$0xff] %vm705, %v693
      %727 = vst.msk [vmem:[#allocation2 + $0xa8] sm:$0xff] %vm705, %v694
      %728 = vst.msk [vmem:[#allocation2 + $0xb0] sm:$0xff] %vm705, %v695
      %729 = vst.msk [vmem:[#allocation2 + $0xb8] sm:$0xff] %vm705, %v696
      %730 = vst.msk [vmem:[#allocation2 + $0xc0] sm:$0xff] %vm705, %v697
      %731 = vst.msk [vmem:[#allocation2 + $0xc8] sm:$0xff] %vm705, %v698
      %732 = vst.msk [vmem:[#allocation2 + $0xd0] sm:$0xff] %vm705, %v699
      %733 = vst.msk [vmem:[#allocation2 + $0xd8] sm:$0xff] %vm705, %v700
      %734 = vst.msk [vmem:[#allocation2 + $0xe0] sm:$0xff] %vm705, %v701
      %735 = vst.msk [vmem:[#allocation2 + $0xe8] sm:$0xff] %vm705, %v702
      %736 = vst.msk [vmem:[#allocation2 + $0xf0] sm:$0xff] %vm705, %v703
      %737 = vst.msk [vmem:[#allocation2 + $0xf8] sm:$0xff] %vm705, %v704
      // Predicated region
      $region37: #{matmul_bias_act.1} parent=31 // pred_check
        %p738 = pneg %p260
      $region38: #{matmul_bias_act.1} parent=31 // pred_check_branch
        %740 = sbr.rel (%p738) target = $region40
      $region39: #{matmul_bias_act.1} parent=31 // pred_region
        %v741 = vld [vmem:[#allocation2] sm:$0xff]
        %v742 = vld [vmem:[#allocation2 + $0x8] sm:$0xff]
        %v743 = vld [vmem:[#allocation2 + $0x10] sm:$0xff]
        %v744 = vld [vmem:[#allocation2 + $0x18] sm:$0xff]
        %v745 = vld [vmem:[#allocation2 + $0x20] sm:$0xff]
        %v746 = vld [vmem:[#allocation2 + $0x28] sm:$0xff]
        %v747 = vld [vmem:[#allocation2 + $0x30] sm:$0xff]
        %v748 = vld [vmem:[#allocation2 + $0x38] sm:$0xff]
        %v749 = vld [vmem:[#allocation2 + $0x40] sm:$0xff]
        %v750 = vld [vmem:[#allocation2 + $0x48] sm:$0xff]
        %v751 = vld [vmem:[#allocation2 + $0x50] sm:$0xff]
        %v752 = vld [vmem:[#allocation2 + $0x58] sm:$0xff]
        %v753 = vld [vmem:[#allocation2 + $0x60] sm:$0xff]
        %v754 = vld [vmem:[#allocation2 + $0x68] sm:$0xff]
        %v755 = vld [vmem:[#allocation2 + $0x70] sm:$0xff]
        %v756 = vld [vmem:[#allocation2 + $0x78] sm:$0xff]
        %v757 = vld [vmem:[#allocation2 + $0x80] sm:$0xff]
        %v758 = vld [vmem:[#allocation2 + $0x88] sm:$0xff]
        %v759 = vld [vmem:[#allocation2 + $0x90] sm:$0xff]
        %v760 = vld [vmem:[#allocation2 + $0x98] sm:$0xff]
        %v761 = vld [vmem:[#allocation2 + $0xa0] sm:$0xff]
        %v762 = vld [vmem:[#allocation2 + $0xa8] sm:$0xff]
        %v763 = vld [vmem:[#allocation2 + $0xb0] sm:$0xff]
        %v764 = vld [vmem:[#allocation2 + $0xb8] sm:$0xff]
        %v765 = vld [vmem:[#allocation2 + $0xc0] sm:$0xff]
        %v766 = vld [vmem:[#allocation2 + $0xc8] sm:$0xff]
        %v767 = vld [vmem:[#allocation2 + $0xd0] sm:$0xff]
        %v768 = vld [vmem:[#allocation2 + $0xd8] sm:$0xff]
        %v769 = vld [vmem:[#allocation2 + $0xe0] sm:$0xff]
        %v770 = vld [vmem:[#allocation2 + $0xe8] sm:$0xff]
        %v771 = vld [vmem:[#allocation2 + $0xf0] sm:$0xff]
        %v772 = vld [vmem:[#allocation2 + $0xf8] sm:$0xff]
        %v773 = vld [vmem:[%s249] sm:$0x1]
        %v775 = vlaneseq
        %v776 = vshrl.u32 %v775, 7
        %v777 = vsub.s32 0, %v776
        %v778 = vrot.slane %v773, %v777
        %v780 = vadd.f32 %v741, %v778
        %v781 = vadd.f32 %v742, %v778
        %v782 = vadd.f32 %v743, %v778
        %v783 = vadd.f32 %v744, %v778
        %v784 = vadd.f32 %v745, %v778
        %v785 = vadd.f32 %v746, %v778
        %v786 = vadd.f32 %v747, %v778
        %v787 = vadd.f32 %v748, %v778
        %v788 = vadd.f32 %v749, %v778
        %v789 = vadd.f32 %v750, %v778
        %v790 = vadd.f32 %v751, %v778
        %v791 = vadd.f32 %v752, %v778
        %v792 = vadd.f32 %v753, %v778
        %v793 = vadd.f32 %v754, %v778
        %v794 = vadd.f32 %v755, %v778
        %v795 = vadd.f32 %v756, %v778
        %v796 = vadd.f32 %v757, %v778
        %v797 = vadd.f32 %v758, %v778
        %v798 = vadd.f32 %v759, %v778
        %v799 = vadd.f32 %v760, %v778
        %v800 = vadd.f32 %v761, %v778
        %v801 = vadd.f32 %v762, %v778
        %v802 = vadd.f32 %v763, %v778
        %v803 = vadd.f32 %v764, %v778
        %v804 = vadd.f32 %v765, %v778
        %v805 = vadd.f32 %v766, %v778
        %v806 = vadd.f32 %v767, %v778
        %v807 = vadd.f32 %v768, %v778
        %v808 = vadd.f32 %v769, %v778
        %v809 = vadd.f32 %v770, %v778
        %v810 = vadd.f32 %v771, %v778
        %v811 = vadd.f32 %v772, %v778
        %v812 = vxor.u32 %v780, 2147483648
        %v813 = vxor.u32 %v781, 2147483648
        %v814 = vxor.u32 %v782, 2147483648
        %v815 = vxor.u32 %v783, 2147483648
        %v816 = vxor.u32 %v784, 2147483648
        %v817 = vxor.u32 %v785, 2147483648
        %v818 = vxor.u32 %v786, 2147483648
        %v819 = vxor.u32 %v787, 2147483648
        %v820 = vxor.u32 %v788, 2147483648
        %v821 = vxor.u32 %v789, 2147483648
        %v822 = vxor.u32 %v790, 2147483648
        %v823 = vxor.u32 %v791, 2147483648
        %v824 = vxor.u32 %v792, 2147483648
        %v825 = vxor.u32 %v793, 2147483648
        %v826 = vxor.u32 %v794, 2147483648
        %v827 = vxor.u32 %v795, 2147483648
        %v828 = vxor.u32 %v796, 2147483648
        %v829 = vxor.u32 %v797, 2147483648
        %v830 = vxor.u32 %v798, 2147483648
        %v831 = vxor.u32 %v799, 2147483648
        %v832 = vxor.u32 %v800, 2147483648
        %v833 = vxor.u32 %v801, 2147483648
        %v834 = vxor.u32 %v802, 2147483648
        %v835 = vxor.u32 %v803, 2147483648
        %v836 = vxor.u32 %v804, 2147483648
        %v837 = vxor.u32 %v805, 2147483648
        %v838 = vxor.u32 %v806, 2147483648
        %v839 = vxor.u32 %v807, 2147483648
        %v840 = vxor.u32 %v808, 2147483648
        %v841 = vxor.u32 %v809, 2147483648
        %v842 = vxor.u32 %v810, 2147483648
        %v843 = vxor.u32 %v811, 2147483648
        %v844 = vmul.f32 %v812, 1.442695
        %v845 = vpow.pop %v844
        %v846 = vmul.f32 %v813, 1.442695
        %v847 = vpow.pop %v846
        %v848 = vmul.f32 %v814, 1.442695
        %v849 = vpow.pop %v848
        %v850 = vmul.f32 %v815, 1.442695
        %v851 = vpow.pop %v850
        %v852 = vmul.f32 %v816, 1.442695
        %v853 = vpow.pop %v852
        %v854 = vmul.f32 %v817, 1.442695
        %v855 = vpow.pop %v854
        %v856 = vmul.f32 %v818, 1.442695
        %v857 = vpow.pop %v856
        %v858 = vmul.f32 %v819, 1.442695
        %v859 = vpow.pop %v858
        %v860 = vmul.f32 %v820, 1.442695
        %v861 = vpow.pop %v860
        %v862 = vmul.f32 %v821, 1.442695
        %v863 = vpow.pop %v862
        %v864 = vmul.f32 %v822, 1.442695
        %v865 = vpow.pop %v864
        %v866 = vmul.f32 %v823, 1.442695
        %v867 = vpow.pop %v866
        %v868 = vmul.f32 %v824, 1.442695
        %v869 = vpow.pop %v868
        %v870 = vmul.f32 %v825, 1.442695
        %v871 = vpow.pop %v870
        %v872 = vmul.f32 %v826, 1.442695
        %v873 = vpow.pop %v872
        %v874 = vmul.f32 %v827, 1.442695
        %v875 = vpow.pop %v874
        %v876 = vmul.f32 %v828, 1.442695
        %v877 = vpow.pop %v876
        %v878 = vmul.f32 %v829, 1.442695
        %v879 = vpow.pop %v878
        %v880 = vmul.f32 %v830, 1.442695
        %v881 = vpow.pop %v880
        %v882 = vmul.f32 %v831, 1.442695
        %v883 = vpow.pop %v882
        %v884 = vmul.f32 %v832, 1.442695
        %v885 = vpow.pop %v884
        %v886 = vmul.f32 %v833, 1.442695
        %v887 = vpow.pop %v886
        %v888 = vmul.f32 %v834, 1.442695
        %v889 = vpow.pop %v888
        %v890 = vmul.f32 %v835, 1.442695
        %v891 = vpow.pop %v890
        %v892 = vmul.f32 %v836, 1.442695
        %v893 = vpow.pop %v892
        %v894 = vmul.f32 %v837, 1.442695
        %v895 = vpow.pop %v894
        %v896 = vmul.f32 %v838, 1.442695
        %v897 = vpow.pop %v896
        %v898 = vmul.f32 %v839, 1.442695
        %v899 = vpow.pop %v898
        %v900 = vmul.f32 %v840, 1.442695
        %v901 = vpow.pop %v900
        %v902 = vmul.f32 %v841, 1.442695
        %v903 = vpow.pop %v902
        %v904 = vmul.f32 %v842, 1.442695
        %v905 = vpow.pop %v904
        %v906 = vmul.f32 %v843, 1.442695
        %v907 = vpow.pop %v906
        %v908 = vadd.f32 %v845, 1.0
        %v909 = vadd.f32 %v847, 1.0
        %v910 = vadd.f32 %v849, 1.0
        %v911 = vadd.f32 %v851, 1.0
        %v912 = vadd.f32 %v853, 1.0
        %v913 = vadd.f32 %v855, 1.0
        %v914 = vadd.f32 %v857, 1.0
        %v915 = vadd.f32 %v859, 1.0
        %v916 = vadd.f32 %v861, 1.0
        %v917 = vadd.f32 %v863, 1.0
        %v918 = vadd.f32 %v865, 1.0
        %v919 = vadd.f32 %v867, 1.0
        %v920 = vadd.f32 %v869, 1.0
        %v921 = vadd.f32 %v871, 1.0
        %v922 = vadd.f32 %v873, 1.0
        %v923 = vadd.f32 %v875, 1.0
        %v924 = vadd.f32 %v877, 1.0
        %v925 = vadd.f32 %v879, 1.0
        %v926 = vadd.f32 %v881, 1.0
        %v927 = vadd.f32 %v883, 1.0
        %v928 = vadd.f32 %v885, 1.0
        %v929 = vadd.f32 %v887, 1.0
        %v930 = vadd.f32 %v889, 1.0
        %v931 = vadd.f32 %v891, 1.0
        %v932 = vadd.f32 %v893, 1.0
        %v933 = vadd.f32 %v895, 1.0
        %v934 = vadd.f32 %v897, 1.0
        %v935 = vadd.f32 %v899, 1.0
        %v936 = vadd.f32 %v901, 1.0
        %v937 = vadd.f32 %v903, 1.0
        %v938 = vadd.f32 %v905, 1.0
        %v939 = vadd.f32 %v907, 1.0
        %v940 = vrcp.pop %v908
        %v941 = vmul.f32 1.0, %v940
        %v942 = vrcp.pop %v909
        %v943 = vmul.f32 1.0, %v942
        %v944 = vrcp.pop %v910
        %v945 = vmul.f32 1.0, %v944
        %v946 = vrcp.pop %v911
        %v947 = vmul.f32 1.0, %v946
        %v948 = vrcp.pop %v912
        %v949 = vmul.f32 1.0, %v948
        %v950 = vrcp.pop %v913
        %v951 = vmul.f32 1.0, %v950
        %v952 = vrcp.pop %v914
        %v953 = vmul.f32 1.0, %v952
        %v954 = vrcp.pop %v915
        %v955 = vmul.f32 1.0, %v954
        %v956 = vrcp.pop %v916
        %v957 = vmul.f32 1.0, %v956
        %v958 = vrcp.pop %v917
        %v959 = vmul.f32 1.0, %v958
        %v960 = vrcp.pop %v918
        %v961 = vmul.f32 1.0, %v960
        %v962 = vrcp.pop %v919
        %v963 = vmul.f32 1.0, %v962
        %v964 = vrcp.pop %v920
        %v965 = vmul.f32 1.0, %v964
        %v966 = vrcp.pop %v921
        %v967 = vmul.f32 1.0, %v966
        %v968 = vrcp.pop %v922
        %v969 = vmul.f32 1.0, %v968
        %v970 = vrcp.pop %v923
        %v971 = vmul.f32 1.0, %v970
        %v972 = vrcp.pop %v924
        %v973 = vmul.f32 1.0, %v972
        %v974 = vrcp.pop %v925
        %v975 = vmul.f32 1.0, %v974
        %v976 = vrcp.pop %v926
        %v977 = vmul.f32 1.0, %v976
        %v978 = vrcp.pop %v927
        %v979 = vmul.f32 1.0, %v978
        %v980 = vrcp.pop %v928
        %v981 = vmul.f32 1.0, %v980
        %v982 = vrcp.pop %v929
        %v983 = vmul.f32 1.0, %v982
        %v984 = vrcp.pop %v930
        %v985 = vmul.f32 1.0, %v984
        %v986 = vrcp.pop %v931
        %v987 = vmul.f32 1.0, %v986
        %v988 = vrcp.pop %v932
        %v989 = vmul.f32 1.0, %v988
        %v990 = vrcp.pop %v933
        %v991 = vmul.f32 1.0, %v990
        %v992 = vrcp.pop %v934
        %v993 = vmul.f32 1.0, %v992
        %v994 = vrcp.pop %v935
        %v995 = vmul.f32 1.0, %v994
        %v996 = vrcp.pop %v936
        %v997 = vmul.f32 1.0, %v996
        %v998 = vrcp.pop %v937
        %v999 = vmul.f32 1.0, %v998
        %v1000 = vrcp.pop %v938
        %v1001 = vmul.f32 1.0, %v1000
        %v1002 = vrcp.pop %v939
        %v1003 = vmul.f32 1.0, %v1002
        %v1004 = vmul.f32 %v780, %v941
        %v1005 = vmul.f32 %v781, %v943
        %v1006 = vmul.f32 %v782, %v945
        %v1007 = vmul.f32 %v783, %v947
        %v1008 = vmul.f32 %v784, %v949
        %v1009 = vmul.f32 %v785, %v951
        %v1010 = vmul.f32 %v786, %v953
        %v1011 = vmul.f32 %v787, %v955
        %v1012 = vmul.f32 %v788, %v957
        %v1013 = vmul.f32 %v789, %v959
        %v1014 = vmul.f32 %v790, %v961
        %v1015 = vmul.f32 %v791, %v963
        %v1016 = vmul.f32 %v792, %v965
        %v1017 = vmul.f32 %v793, %v967
        %v1018 = vmul.f32 %v794, %v969
        %v1019 = vmul.f32 %v795, %v971
        %v1020 = vmul.f32 %v796, %v973
        %v1021 = vmul.f32 %v797, %v975
        %v1022 = vmul.f32 %v798, %v977
        %v1023 = vmul.f32 %v799, %v979
        %v1024 = vmul.f32 %v800, %v981
        %v1025 = vmul.f32 %v801, %v983
        %v1026 = vmul.f32 %v802, %v985
        %v1027 = vmul.f32 %v803, %v987
        %v1028 = vmul.f32 %v804, %v989
        %v1029 = vmul.f32 %v805, %v991
        %v1030 = vmul.f32 %v806, %v993
        %v1031 = vmul.f32 %v807, %v995
        %v1032 = vmul.f32 %v808, %v997
        %v1033 = vmul.f32 %v809, %v999
        %v1034 = vmul.f32 %v810, %v1001
        %v1035 = vmul.f32 %v811, %v1003
        %v1036 = vpack.c.bf16 %v1005, %v1004
        %v1037 = vpack.c.bf16 %v1007, %v1006
        %v1038 = vpack.c.bf16 %v1009, %v1008
        %v1039 = vpack.c.bf16 %v1011, %v1010
        %v1040 = vpack.c.bf16 %v1013, %v1012
        %v1041 = vpack.c.bf16 %v1015, %v1014
        %v1042 = vpack.c.bf16 %v1017, %v1016
        %v1043 = vpack.c.bf16 %v1019, %v1018
        %v1044 = vpack.c.bf16 %v1021, %v1020
        %v1045 = vpack.c.bf16 %v1023, %v1022
        %v1046 = vpack.c.bf16 %v1025, %v1024
        %v1047 = vpack.c.bf16 %v1027, %v1026
        %v1048 = vpack.c.bf16 %v1029, %v1028
        %v1049 = vpack.c.bf16 %v1031, %v1030
        %v1050 = vpack.c.bf16 %v1033, %v1032
        %v1051 = vpack.c.bf16 %v1035, %v1034
        %v1068 = vunpack.c.l.b16 %v1036
        %v1069 = vunpack.c.h.b16 %v1036
        %v1070 = vunpack.c.l.b16 %v1037
        %v1071 = vunpack.c.h.b16 %v1037
        %v1072 = vunpack.c.l.b16 %v1038
        %v1073 = vunpack.c.h.b16 %v1038
        %v1074 = vunpack.c.l.b16 %v1039
        %v1075 = vunpack.c.h.b16 %v1039
        %v1076 = vunpack.c.l.b16 %v1040
        %v1077 = vunpack.c.h.b16 %v1040
        %v1078 = vunpack.c.l.b16 %v1041
        %v1079 = vunpack.c.h.b16 %v1041
        %v1080 = vunpack.c.l.b16 %v1042
        %v1081 = vunpack.c.h.b16 %v1042
        %v1082 = vunpack.c.l.b16 %v1043
        %v1083 = vunpack.c.h.b16 %v1043
        %v1084 = vunpack.c.l.b16 %v1044
        %v1085 = vunpack.c.h.b16 %v1044
        %v1086 = vunpack.c.l.b16 %v1045
        %v1087 = vunpack.c.h.b16 %v1045
        %v1088 = vunpack.c.l.b16 %v1046
        %v1089 = vunpack.c.h.b16 %v1046
        %v1090 = vunpack.c.l.b16 %v1047
        %v1091 = vunpack.c.h.b16 %v1047
        %v1092 = vunpack.c.l.b16 %v1048
        %v1093 = vunpack.c.h.b16 %v1048
        %v1094 = vunpack.c.l.b16 %v1049
        %v1095 = vunpack.c.h.b16 %v1049
        %v1096 = vunpack.c.l.b16 %v1050
        %v1097 = vunpack.c.h.b16 %v1050
        %v1098 = vunpack.c.l.b16 %v1051
        %v1099 = vunpack.c.h.b16 %v1051
        %v1100 = vpack.c.b16 %v1068, %v1068
        %v1101 = vpack.c.b16 %v1069, %v1069
        %v1102 = vpack.c.b16 %v1070, %v1070
        %v1103 = vpack.c.b16 %v1071, %v1071
        %v1104 = vpack.c.b16 %v1072, %v1072
        %v1105 = vpack.c.b16 %v1073, %v1073
        %v1106 = vpack.c.b16 %v1074, %v1074
        %v1107 = vpack.c.b16 %v1075, %v1075
        %v1108 = vpack.c.b16 %v1076, %v1076
        %v1109 = vpack.c.b16 %v1077, %v1077
        %v1110 = vpack.c.b16 %v1078, %v1078
        %v1111 = vpack.c.b16 %v1079, %v1079
        %v1112 = vpack.c.b16 %v1080, %v1080
        %v1113 = vpack.c.b16 %v1081, %v1081
        %v1114 = vpack.c.b16 %v1082, %v1082
        %v1115 = vpack.c.b16 %v1083, %v1083
        %v1116 = vpack.c.b16 %v1084, %v1084
        %v1117 = vpack.c.b16 %v1085, %v1085
        %v1118 = vpack.c.b16 %v1086, %v1086
        %v1119 = vpack.c.b16 %v1087, %v1087
        %v1120 = vpack.c.b16 %v1088, %v1088
        %v1121 = vpack.c.b16 %v1089, %v1089
        %v1122 = vpack.c.b16 %v1090, %v1090
        %v1123 = vpack.c.b16 %v1091, %v1091
        %v1124 = vpack.c.b16 %v1092, %v1092
        %v1125 = vpack.c.b16 %v1093, %v1093
        %v1126 = vpack.c.b16 %v1094, %v1094
        %v1127 = vpack.c.b16 %v1095, %v1095
        %v1128 = vpack.c.b16 %v1096, %v1096
        %v1129 = vpack.c.b16 %v1097, %v1097
        %v1130 = vpack.c.b16 %v1098, %v1098
        %v1131 = vpack.c.b16 %v1099, %v1099
        %vm1164 = vcmask 519168
        %1165 = vst.msk [vmem:[%s257] sm:$0xf] %vm1164, %v1100
        %1166 = vst.msk [vmem:[%s257 + $0x4] sm:$0xf] %vm1164, %v1101
        %1167 = vst.msk [vmem:[%s257 + $0x8] sm:$0xf] %vm1164, %v1102
        %1168 = vst.msk [vmem:[%s257 + $0xc] sm:$0xf] %vm1164, %v1103
        %1169 = vst.msk [vmem:[%s257 + $0x10] sm:$0xf] %vm1164, %v1104
        %1170 = vst.msk [vmem:[%s257 + $0x14] sm:$0xf] %vm1164, %v1105
        %1171 = vst.msk [vmem:[%s257 + $0x18] sm:$0xf] %vm1164, %v1106
        %1172 = vst.msk [vmem:[%s257 + $0x1c] sm:$0xf] %vm1164, %v1107
        %1173 = vst.msk [vmem:[%s257 + $0x20] sm:$0xf] %vm1164, %v1108
        %1174 = vst.msk [vmem:[%s257 + $0x24] sm:$0xf] %vm1164, %v1109
        %1175 = vst.msk [vmem:[%s257 + $0x28] sm:$0xf] %vm1164, %v1110
        %1176 = vst.msk [vmem:[%s257 + $0x2c] sm:$0xf] %vm1164, %v1111
        %1177 = vst.msk [vmem:[%s257 + $0x30] sm:$0xf] %vm1164, %v1112
        %1178 = vst.msk [vmem:[%s257 + $0x34] sm:$0xf] %vm1164, %v1113
        %1179 = vst.msk [vmem:[%s257 + $0x38] sm:$0xf] %vm1164, %v1114
        %1180 = vst.msk [vmem:[%s257 + $0x3c] sm:$0xf] %vm1164, %v1115
        %1181 = vst.msk [vmem:[%s257 + $0x40] sm:$0xf] %vm1164, %v1116
        %1182 = vst.msk [vmem:[%s257 + $0x44] sm:$0xf] %vm1164, %v1117
        %1183 = vst.msk [vmem:[%s257 + $0x48] sm:$0xf] %vm1164, %v1118
        %1184 = vst.msk [vmem:[%s257 + $0x4c] sm:$0xf] %vm1164, %v1119
        %1185 = vst.msk [vmem:[%s257 + $0x50] sm:$0xf] %vm1164, %v1120
        %1186 = vst.msk [vmem:[%s257 + $0x54] sm:$0xf] %vm1164, %v1121
        %1187 = vst.msk [vmem:[%s257 + $0x58] sm:$0xf] %vm1164, %v1122
        %1188 = vst.msk [vmem:[%s257 + $0x5c] sm:$0xf] %vm1164, %v1123
        %1189 = vst.msk [vmem:[%s257 + $0x60] sm:$0xf] %vm1164, %v1124
        %1190 = vst.msk [vmem:[%s257 + $0x64] sm:$0xf] %vm1164, %v1125
        %1191 = vst.msk [vmem:[%s257 + $0x68] sm:$0xf] %vm1164, %v1126
        %1192 = vst.msk [vmem:[%s257 + $0x6c] sm:$0xf] %vm1164, %v1127
        %1193 = vst.msk [vmem:[%s257 + $0x70] sm:$0xf] %vm1164, %v1128
        %1194 = vst.msk [vmem:[%s257 + $0x74] sm:$0xf] %vm1164, %v1129
        %1195 = vst.msk [vmem:[%s257 + $0x78] sm:$0xf] %vm1164, %v1130
        %1196 = vst.msk [vmem:[%s257 + $0x7c] sm:$0xf] %vm1164, %v1131
      $region40: #{matmul_bias_act.1} parent=31 // pred_fallthru
        _
      %s1197 = smul.u32 32, %s19
      %p1198 = scmp.lt.s32.totalorder %s1197, 63
      %s1199 = scalar_select %p1198, %s1197, 63
      %p1200 = scmp.lt.s32.totalorder %s20, 0
      %s1201 = scalar_select %p1200, %s20, 0
      %s1202 = sadd.s32 %s1201, %s1199
      %s1203 = smul.addr %s1202, 4
      %s1204 = scalar_lea.vmem %s3, %s1203
      // Predicated region
      $region41: #{matmul_bias_act.1} parent=31 // pred_check
        %p1205 = pneg %p135
      $region42: #{matmul_bias_act.1} parent=31 // pred_check_branch
        %1207 = sbr.rel (%p1205) target = $region44
      $region43: #{matmul_bias_act.1} parent=31 // pred_region
        %s1208 = smul.u32 32, %s19
      $region44: #{matmul_bias_act.1} parent=31 // pred_fallthru
        _
    $region32: #{matmul_bias_act.1} parent=5 // pred_fallthru
      _
    %p1209 = scmp.le.s32.totalorder 2, %s9
    // Predicated region
    $region45: #{matmul_bias_act.1} parent=5 // pred_check
      %p1210 = pneg %p1209
    $region46: #{matmul_bias_act.1} parent=5 // pred_check_branch
      %1212 = sbr.rel (%p1210) target = $region48
    $region47: #{matmul_bias_act.1} parent=5 // pred_region
      %s1213 = ssub.s32 %s9, 2
      // Predicated region
      $region49: #{matmul_bias_act.1} parent=47 // pred_check
        %p1214 = pneg %p141
      $region50: #{matmul_bias_act.1} parent=47 // pred_check_branch
        %1216 = sbr.rel (%p1214) target = $region52
      $region51: #{matmul_bias_act.1} parent=47 // pred_region
        %s1217 = smul.u32 32, %s22
        %p1218 = scmp.lt.s32.totalorder %s1217, 63
        %s1219 = scalar_select %p1218, %s1217, 63
        %p1220 = scmp.lt.s32.totalorder %s23, 0
        %s1221 = scalar_select %p1220, %s23, 0
        %s1222 = sadd.s32 %s1221, %s1219
        %s1223 = smul.addr %s1222, 4
        %s1224 = scalar_lea.vmem %s3, %s1223
      $region52: #{matmul_bias_act.1} parent=47 // pred_fallthru
        _
    $region48: #{matmul_bias_act.1} parent=5 // pred_fallthru
      _
  $region6: #{matmul_bias_act.1} parent=0 // loop_footer
    %s13 = sadd.s32 1, %s9
  $region7: #{matmul_bias_act.1} parent=0 // loop_footer_branch
    %8 = sbr.rel target = $region3
  $region8: #{matmul_bias_act.1} parent=0 // loop_exit
    _

</llo_original>
